<compile_context>
chip_gen: v6e
topology: v6e:2x2x1
jax: 0.10.0
libtpu: 0.0.40
codegen_flags: <defaults>
</compile_context>

<pallas_src>
import math

import jax
import jax.numpy as jnp
from jax.experimental import pallas as pl
from jax.experimental.pallas import tpu as pltpu

_LANE = 128


def _round_up(x, m):
    return ((x + m - 1) // m) * m


def _weighted_sum_kernel(w_ref, h_ref, o_ref, acc_ref):
    """Grid = (row_tiles, L).  For each row tile, sweep the (innermost) layer
    axis accumulating w[l] * hidden[l] into an f32 VMEM scratch; store to the
    output block on the last layer.

    w_ref   : SMEM (L,)          gamma-folded per-layer weights
    h_ref   : VMEM (TR, 128)     hidden state tile of layer l (L dim squeezed)
    o_ref   : VMEM (TR, 128)     output tile (same block across the layer axis)
    acc_ref : VMEM (TR, 128) f32 scratch accumulator
    """
    l = pl.program_id(1)
    w = w_ref[l]                                  # hoist scalar read once
    h = h_ref[...].astype(jnp.float32)            # no-op for f32 inputs

    @pl.when(l == 0)
    def _init():
        acc_ref[...] = w * h

    @pl.when(l != 0)
    def _accumulate():
        acc_ref[...] += w * h

    @pl.when(l == pl.num_programs(1) - 1)
    def _store():
        o_ref[...] = acc_ref[...].astype(o_ref.dtype)


def auto_embedder_weighted(hidden_states, bert_weights, bert_gamma, *, row_tile=2048):
    """hidden_states: [L, B, S, H] (f32 or bf16)
       bert_weights : [L, 1] float32   (as in the torch module)
       bert_gamma   : [1, 1] float32
       returns      : [B, S, H] in hidden_states.dtype
    """
    L, B, S, H = hidden_states.shape
    out_dtype = hidden_states.dtype

    # Fold gamma into the per-layer weights (free in the wrapper).
    w_eff = (bert_gamma.reshape(()) * bert_weights.reshape(L)).astype(jnp.float32)

    # Lane-dense layout: flatten, pad to a whole number of (8,128)-aligned
    # row tiles, and view as (L, rows, 128).
    n = B * S * H
    rows = pl.cdiv(n, _LANE)
    tr = min(row_tile, _round_up(rows, 8))        # rows per tile, multiple of 8
    rows_padded = _round_up(rows, tr)
    n_padded = rows_padded * _LANE

    h_flat = hidden_states.reshape(L, n)
    if n_padded != n:
        h_flat = jnp.pad(h_flat, ((0, 0), (0, n_padded - n)))
    h_tiles = h_flat.reshape(L, rows_padded, _LANE)

    out = pl.pallas_call(
        _weighted_sum_kernel,
        out_shape=jax.ShapeDtypeStruct((rows_padded, _LANE), out_dtype),
        grid_spec=pltpu.PrefetchScalarGridSpec(
            num_scalar_prefetch=0,
            # rows axis parallel (megacore shardable), layer reduction innermost.
            grid=(rows_padded // tr, L),
            in_specs=[
                pl.BlockSpec(memory_space=pltpu.SMEM),                   # w_eff
                pl.BlockSpec((None, tr, _LANE), lambda i, l: (l, i, 0)),  # hidden[l]
            ],
            out_specs=pl.BlockSpec((tr, _LANE), lambda i, l: (i, 0)),
            scratch_shapes=[pltpu.VMEM((tr, _LANE), jnp.float32)],
        ),
        compiler_params=pltpu.CompilerParams(
            dimension_semantics=("parallel", "arbitrary"),
            vmem_limit_bytes=64 * 1024 * 1024,
        ),
    )(w_eff, h_tiles)

    return out.reshape(-1)[:n].reshape(B, S, H)


def _xavier_normal(key, shape):
    # torch.nn.init.xavier_normal_: std = sqrt(2 / (fan_in + fan_out))
    fan_out, fan_in = shape  # 2-D (out, in) like the torch params
    std = math.sqrt(2.0 / (fan_in + fan_out))
    return std * jax.random.normal(key, shape, dtype=jnp.float32)


def _reference(hidden_states, bert_weights, bert_gamma):
    L = hidden_states.shape[0]
    return bert_gamma[0, 0] * jnp.sum(
        hidden_states.astype(jnp.float32) * bert_weights.reshape(L, 1, 1, 1), axis=0
    )


if __name__ == "__main__":
    key = jax.random.PRNGKey(0)
    k_h, k_w, k_g, k_h2 = jax.random.split(key, 4)

    # 13 hidden-state layers (xlm-roberta-base), batch=2, seq=8, hidden=32.
    L, B, S, H = 13, 2, 8, 32
    hidden_states = jax.random.normal(k_h, (L, B, S, H), dtype=jnp.float32)
    bert_weights = _xavier_normal(k_w, (13, 1))
    bert_gamma = _xavier_normal(k_g, (1, 1))

    out = auto_embedder_weighted(hidden_states, bert_weights, bert_gamma)
    out = jax.block_until_ready(out)
    ref = _reference(hidden_states, bert_weights, bert_gamma)
    assert out.shape == (B, S, H)
    assert jnp.allclose(out, ref, atol=1e-5, rtol=1e-5), "mismatch vs reference (case 1)"

    # Second case exercising multiple row tiles + the lane-dense repack path.
    B2, S2, H2 = 2, 64, 128
    hidden_states2 = jax.random.normal(k_h2, (L, B2, S2, H2), dtype=jnp.float32)
    out2 = auto_embedder_weighted(hidden_states2, bert_weights, bert_gamma, row_tile=64)
    out2 = jax.block_until_ready(out2)
    ref2 = _reference(hidden_states2, bert_weights, bert_gamma)
    assert out2.shape == (B2, S2, H2)
    assert jnp.allclose(out2, ref2, atol=1e-5, rtol=1e-5), "mismatch vs reference (case 2)"

    print("KERNEL_OK")
</pallas_src>

<mosaic_0001>
module attributes {stable_mosaic.version = 11 : i64} {
  func.func @_weighted_sum_kernel(%arg0: i32, %arg1: i32, %arg2: memref<13xf32, #tpu.memory_space<smem>>, %arg3: memref<1x8x128xf32, #tpu.memory_space<vmem>>, %arg4: memref<8x128xf32, #tpu.memory_space<vmem>>, %arg5: memref<8x128xf32, #tpu.memory_space<vmem>>) attributes {dimension_semantics = [#tpu.dimension_semantics<parallel>, #tpu.dimension_semantics<arbitrary>], iteration_bounds = array<i64: 1, 13>, scalar_prefetch = 0 : i64, scratch_operands = 1 : i64, tpu.core_type = #tpu.core_type<tc>, window_params = [{transform_indices = @transform_0, window_bounds = array<i64: 13>}, {transform_indices = @transform_1, window_bounds = array<i64: 1, 8, 128>}, {transform_indices = @transform_2, window_bounds = array<i64: 8, 128>}]} {
    %0 = arith.index_cast %arg1 : i32 to index
    %1 = memref.load %arg2[%0] : memref<13xf32, #tpu.memory_space<smem>>
    %c0 = arith.constant 0 : index
    %c0_0 = arith.constant 0 : index
    %c0_1 = arith.constant 0 : index
    %2 = vector.load %arg3[%c0, %c0_0, %c0_1] : memref<1x8x128xf32, #tpu.memory_space<vmem>>, vector<1x8x128xf32>
    %3 = vector.shape_cast %2 : vector<1x8x128xf32> to vector<8x128xf32>
    %c0_i32 = arith.constant 0 : i32
    %4 = arith.cmpi eq, %arg1, %c0_i32 : i32
    %5 = arith.extui %4 : i1 to i32
    %c0_i32_2 = arith.constant 0 : i32
    %6 = arith.cmpi ne, %5, %c0_i32_2 : i32
    scf.if %6 {
      %13 = vector.broadcast %1 : f32 to vector<8x128xf32>
      %14 = arith.mulf %13, %3 : vector<8x128xf32>
      %c0_6 = arith.constant 0 : index
      %c0_7 = arith.constant 0 : index
      %15 = vector.load %arg5[%c0_6, %c0_7] : memref<8x128xf32, #tpu.memory_space<vmem>>, vector<8x128xf32>
      tpu.vector_store %arg5[%c0_6, %c0_7], %14 {strides = array<i32>} : memref<8x128xf32, #tpu.memory_space<vmem>>, vector<8x128xf32>,
    } else {
    }
    %c0_i32_3 = arith.constant 0 : i32
    %7 = arith.cmpi ne, %arg1, %c0_i32_3 : i32
    %8 = arith.extui %7 : i1 to i32
    %c0_i32_4 = arith.constant 0 : i32
    %9 = arith.cmpi ne, %8, %c0_i32_4 : i32
    scf.if %9 {
      %c0_6 = arith.constant 0 : index
      %c0_7 = arith.constant 0 : index
      %13 = vector.load %arg5[%c0_6, %c0_7] : memref<8x128xf32, #tpu.memory_space<vmem>>, vector<8x128xf32>
      %14 = vector.broadcast %1 : f32 to vector<8x128xf32>
      %15 = arith.mulf %14, %3 : vector<8x128xf32>
      %16 = arith.addf %13, %15 : vector<8x128xf32>
      %c0_8 = arith.constant 0 : index
      %c0_9 = arith.constant 0 : index
      %17 = vector.load %arg5[%c0_8, %c0_9] : memref<8x128xf32, #tpu.memory_space<vmem>>, vector<8x128xf32>
      tpu.vector_store %arg5[%c0_8, %c0_9], %16 {strides = array<i32>} : memref<8x128xf32, #tpu.memory_space<vmem>>, vector<8x128xf32>,
    } else {
    }
    %c12_i32 = arith.constant 12 : i32
    %10 = arith.cmpi eq, %arg1, %c12_i32 : i32
    %11 = arith.extui %10 : i1 to i32
    %c0_i32_5 = arith.constant 0 : i32
    %12 = arith.cmpi ne, %11, %c0_i32_5 : i32
    scf.if %12 {
      %c0_6 = arith.constant 0 : index
      %c0_7 = arith.constant 0 : index
      %13 = vector.load %arg5[%c0_6, %c0_7] : memref<8x128xf32, #tpu.memory_space<vmem>>, vector<8x128xf32>
      %c0_8 = arith.constant 0 : index
      %c0_9 = arith.constant 0 : index
      %14 = vector.load %arg4[%c0_8, %c0_9] : memref<8x128xf32, #tpu.memory_space<vmem>>, vector<8x128xf32>
      tpu.vector_store %arg4[%c0_8, %c0_9], %13 {strides = array<i32>} : memref<8x128xf32, #tpu.memory_space<vmem>>, vector<8x128xf32>,
    } else {
    }
    return
  }
  func.func @transform_0(%arg0: i32, %arg1: i32) -> i32 {
    %c0_i32 = arith.constant 0 : i32
    %c0_i32_0 = arith.constant 0 : i32
    return %c0_i32 : i32
  }
  func.func @transform_1(%arg0: i32, %arg1: i32) -> (i32, i32, i32) {
    %c0_i32 = arith.constant 0 : i32
    %c0_i32_0 = arith.constant 0 : i32
    return %arg1, %arg0, %c0_i32 : i32, i32, i32
  }
  func.func @transform_2(%arg0: i32, %arg1: i32) -> (i32, i32) {
    %c0_i32 = arith.constant 0 : i32
    %c0_i32_0 = arith.constant 0 : i32
    return %arg0, %c0_i32 : i32, i32
  }
}

</mosaic_0001>

<llo_original>
// kernel: tpu_custom_call.1
$region0: #{tpu_custom_call.1}
  #allocation0 [shape = 'u32[]', space=smem, size = 0x4, offset = 0x4, fixed_abs, tag = 'smem constant byte address 0x4 - core index']
  #allocation1 [shape = 'u32[144,128]{1,0:T(1,128)}', space=vmem, size = 0x12000, scoped, tag = 'internal scratch']
  #allocation2 [shape = 'f32[8,128]{1,0:T(8,128)}', space=vmem, size = 0x1000, scoped, tag = 'scratch operand']
  %s0 = inlined_call_operand.hbm [shape: f32[13], index: 0, kind: input, shape index: {}]
  %s1 = inlined_call_operand.hbm [shape: f32[13,8,128], index: 1, kind: input, shape index: {}]
  %s2 = inlined_call_operand.hbm [shape: f32[8,128], index: 2, kind: output, shape index: {}]
  %s3 = sld [smem:[#allocation0]]
  $region61: #{tpu_custom_call.1} parent=0
    _
  %s5 = ssub.s32 1, %s3
  %s6 = scalar_select 0, %s5, %s3
  $region1: #{tpu_custom_call.1} parent=0
    #allocation3 [shape = 'u8[512]{0}', space=smem, size = 0x200, scoped, tag = 'input window, operand 0, single buffered']
    #allocation4 [shape = 's32[2]{0}', space=sflag, size = 0x8, scoped, tag = 'scoped memory for tpu_custom_call.1']
    #allocation5 [shape = 's32[2]{0}', space=sflag, size = 0x8, scoped, tag = 'scoped memory for tpu_custom_call.1']
    #allocation6 [shape = 's32[2]{0}', space=sflag, size = 0x8, scoped, tag = 'scoped memory for tpu_custom_call.1']
    #allocation7 [shape = 'u8[8192]{0}', space=vmem, size = 0x2000, scoped, tag = 'input window, operand 1']
    #allocation8 [shape = 'u8[4096]{0}', space=vmem, size = 0x1000, scoped, tag = 'output window, operand 0, single buffered']
    %7 = vsyncpa [#allocation6], 0
    %8 = vsyncpa [#allocation4], 0
    %s9 = scalar_lea.sflag [#allocation4], 1
    %10 = vsyncpa %s9, 0
    %11 = vsyncpa [#allocation5], 0
    loop: start=0, step=1, limit=15
    $region2: #{tpu_custom_call.1} parent=1 // loop_pre_header
      _
    $region3: #{tpu_custom_call.1} parent=1 // loop_header
      %s13 = sphi 0, %s17
      %p14 = scmp.ge.s32.totalorder %s13, 15
      %s20 = sphi 0, %s32
      %s21 = sphi 0, %s28
      %s22 = sphi 0, %s20
      %s23 = sphi 0, %s21
      %s24 = sphi 0, %s22
      %s25 = sphi 0, %s23
      %s33 = sphi 0, %s33
      %s35 = sphi 0, %s33
      %s36 = sphi 0, %s35
      %s50 = sphi 0, %s36
      %s58 = sphi 0, %s60
      %s61 = sphi 0, %s58
      %s62 = sphi 0, %s61
      %s78 = sphi 0, %s62
      %s84 = sphi 0, %s86
      %s87 = sphi 0, %s84
      %s88 = sphi 0, %s87
      %s104 = sphi 0, %s88
    $region4: #{tpu_custom_call.1} parent=1 // loop_header_branch
      %16 = sbr.rel (%p14) target = $region8
    $region5: #{tpu_custom_call.1} parent=1 // loop_body
      %s18 = ssub.s32 %s13, 1
      %s19 = ssub.s32 %s13, 2
      %s26 = sadd.s32 1, %s21
      %p27 = scmp.ge.s32.totalorder %s26, 13
      %s28 = scalar_select %p27, 0, %s26
      %s29 = sadd.s32 1, %s20
      %s30 = scalar_select %p27, %s29, %s20
      %p31 = scmp.ge.s32.totalorder %s30, 1
      %s32 = scalar_select %p31, 0, %s30
      %s34 = sadd.s32 %s33, 1
      %p37 = scmp.eq.s32.totalorder %s13, 12
      %p38 = scmp.ne.s32.totalorder %s33, %s35
      %p39 = scmp.eq.s32.totalorder %s13, 0
      %p40 = por %p38, %p39
      %p41 = scmp.ne.s32.totalorder %s33, %s35
      %p42 = scmp.eq.s32.totalorder %s18, 12
      %p43 = por %p41, %p42
      %p44 = scmp.ne.s32.totalorder %s35, %s36
      %p45 = scmp.eq.s32.totalorder %s18, 0
      %p46 = por %p44, %p45
      %p47 = scmp.ne.s32.totalorder %s35, %s36
      %p48 = scmp.eq.s32.totalorder %s19, 12
      %p49 = por %p47, %p48
      %p51 = scmp.ne.s32.totalorder %s36, %s50
      %p52 = scmp.eq.s32.totalorder %s19, 0
      %p53 = por %p51, %p52
      %s54 = ssub.s32 %s21, %s28
      %s55 = ssub.s32 %s20, %s32
      %s56 = sor.u32 %s54, %s55
      %p57 = scmp.eq.s32.totalorder %s56, 0
      %s59 = sadd.s32 %s58, 1
      %s60 = scalar_select %p57, %s58, %s59
      %p63 = pneg %p57
      %p64 = scmp.eq.s32.totalorder %s13, 12
      %p65 = por %p63, %p64
      %p66 = scmp.ne.s32.totalorder %s58, %s61
      %p67 = scmp.eq.s32.totalorder %s13, 0
      %p68 = por %p66, %p67
      %p69 = scmp.ne.s32.totalorder %s58, %s61
      %p70 = scmp.eq.s32.totalorder %s18, 12
      %p71 = por %p69, %p70
      %p72 = scmp.ne.s32.totalorder %s61, %s62
      %p73 = scmp.eq.s32.totalorder %s18, 0
      %p74 = por %p72, %p73
      %p75 = scmp.ne.s32.totalorder %s61, %s62
      %p76 = scmp.eq.s32.totalorder %s19, 12
      %p77 = por %p75, %p76
      %p79 = scmp.ne.s32.totalorder %s62, %s78
      %p80 = scmp.eq.s32.totalorder %s19, 0
      %p81 = por %p79, %p80
      %s82 = ssub.s32 %s20, %s32
      %p83 = scmp.eq.s32.totalorder %s82, 0
      %s85 = sadd.s32 %s84, 1
      %s86 = scalar_select %p83, %s84, %s85
      %p89 = pneg %p83
      %p90 = scmp.eq.s32.totalorder %s13, 12
      %p91 = por %p89, %p90
      %p92 = scmp.ne.s32.totalorder %s84, %s87
      %p93 = scmp.eq.s32.totalorder %s13, 0
      %p94 = por %p92, %p93
      %p95 = scmp.ne.s32.totalorder %s84, %s87
      %p96 = scmp.eq.s32.totalorder %s18, 12
      %p97 = por %p95, %p96
      %p98 = scmp.ne.s32.totalorder %s87, %s88
      %p99 = scmp.eq.s32.totalorder %s18, 0
      %p100 = por %p98, %p99
      %p101 = scmp.ne.s32.totalorder %s87, %s88
      %p102 = scmp.eq.s32.totalorder %s19, 12
      %p103 = por %p101, %p102
      %p105 = scmp.ne.s32.totalorder %s88, %s104
      %p106 = scmp.eq.s32.totalorder %s19, 0
      %p107 = por %p105, %p106
      %p108 = scmp.le.s32.totalorder 1, %s13
      %p109 = scmp.lt.s32.totalorder %s13, 14
      %p110 = pnand %p108, %p109
      %p111 = pneg %p110
      // Predicated region
      $region9: #{tpu_custom_call.1} parent=5 // pred_check
        _
      $region10: #{tpu_custom_call.1} parent=5 // pred_check_branch
        %113 = sbr.rel (%p110) target = $region12
      $region11: #{tpu_custom_call.1} parent=5 // pred_region
        %s114 = ssub.s32 %s13, 1
        // Predicated region
        $region13: #{tpu_custom_call.1} parent=11 // pred_check
          %p115 = pneg %p46
        $region14: #{tpu_custom_call.1} parent=11 // pred_check_branch
          %117 = sbr.rel (%p115) target = $region16
        $region15: #{tpu_custom_call.1} parent=11 // pred_region
          %s119 = ssub.s32 16, 16
          %120 = vsyncadd [#allocation6], %s119
          %123 = dma.hbm_to_smem %s0, 16, [#allocation3], [#allocation6]
        $region16: #{tpu_custom_call.1} parent=11 // pred_fallthru
          _
      $region12: #{tpu_custom_call.1} parent=5 // pred_fallthru
        _
      %p124 = scmp.lt.s32.totalorder %s13, 13
      // Predicated region
      $region17: #{tpu_custom_call.1} parent=5 // pred_check
        %p125 = pneg %p124
      $region18: #{tpu_custom_call.1} parent=5 // pred_check_branch
        %127 = sbr.rel (%p125) target = $region20
      $region19: #{tpu_custom_call.1} parent=5 // pred_region
        // Predicated region
        $region21: #{tpu_custom_call.1} parent=19 // pred_check
          %p128 = pneg %p68
        $region22: #{tpu_custom_call.1} parent=19 // pred_check_branch
          %130 = sbr.rel (%p128) target = $region24
        $region23: #{tpu_custom_call.1} parent=19 // pred_region
          %s131 = sand.u32 %s58, 1
          %s132 = scalar_lea.sflag [#allocation4], %s131
          %s133 = sand.u32 %s58, 1
          %s134 = smul.addr %s133, 8
          %s135 = scalar_lea.vmem [#allocation7], %s134
          %s137 = ssub.s32 128, 128
          %138 = vsyncadd %s132, %s137
          %s139 = sadd.s32 %s20, %s21
          %s140 = smul.addr %s139, 128
          %s141 = scalar_lea.hbm %s1, %s140
          %s143 = sshll.u32 %s135, 4
          %s144 = int_to_ptr.vmem [resolvable:$true] %s143
          %146 = dma.hbm_to_vmem [thread:$0]  %s141, 128, %s144, %s132
        $region24: #{tpu_custom_call.1} parent=19 // pred_fallthru
          _
      $region20: #{tpu_custom_call.1} parent=5 // pred_fallthru
        _
      %p147 = scmp.le.s32.totalorder 1, %s13
      %p148 = scmp.lt.s32.totalorder %s13, 14
      %p149 = pnand %p147, %p148
      %p150 = pneg %p149
      // Predicated region
      $region25: #{tpu_custom_call.1} parent=5 // pred_check
        _
      $region26: #{tpu_custom_call.1} parent=5 // pred_check_branch
        %152 = sbr.rel (%p149) target = $region28
      $region27: #{tpu_custom_call.1} parent=5 // pred_region
        %s153 = ssub.s32 %s13, 1
        // Predicated region
        $region29: #{tpu_custom_call.1} parent=27 // pred_check
          %p154 = pneg %p46
        $region30: #{tpu_custom_call.1} parent=27 // pred_check_branch
          %156 = sbr.rel (%p154) target = $region32
        $region31: #{tpu_custom_call.1} parent=27 // pred_region
          %157 = dma.done [#allocation6], 16
        $region32: #{tpu_custom_call.1} parent=27 // pred_fallthru
          _
        %s158 = sand.u32 %s61, 1
        %s159 = scalar_lea.sflag [#allocation4], %s158
        %s160 = sand.u32 %s61, 1
        %s161 = smul.addr %s160, 8
        %s162 = scalar_lea.vmem [#allocation7], %s161
        // Predicated region
        $region33: #{tpu_custom_call.1} parent=27 // pred_check
          %p163 = pneg %p74
        $region34: #{tpu_custom_call.1} parent=27 // pred_check_branch
          %165 = sbr.rel (%p163) target = $region36
        $region35: #{tpu_custom_call.1} parent=27 // pred_region
          %166 = dma.done %s159, 128
        $region36: #{tpu_custom_call.1} parent=27 // pred_fallthru
          _
        %167 = sfence
        %p168 = pneg %p46
        %p169 = pneg %p43
        %s170 = sand.u32 %s61, 1
        %s171 = scalar_lea.sflag [#allocation4], %s170
        %s172 = sand.u32 %s61, 1
        %s173 = smul.addr %s172, 8
        %s174 = scalar_lea.vmem [#allocation7], %s173
        %p175 = pneg %p74
        %p176 = pneg %p71
        %p177 = pneg %p100
        %p178 = pneg %p97
        %s179 = sld [smem:[#allocation3 + %s23]]
        %v180 = vld [vmem:[%s162] sm:$0xff]
        %p181 = scmp.eq.s32.totalorder %s23, 0
        // Predicated region
        $region37: #{tpu_custom_call.1} parent=27 // pred_check
          %p182 = pneg %p181
        $region38: #{tpu_custom_call.1} parent=27 // pred_check_branch
          %184 = sbr.rel (%p182) target = $region40
        $region39: #{tpu_custom_call.1} parent=27 // pred_region
          %v185 = vstv %s179
          %v186 = vmul.f32 %v185, %v180
          %187 = vst [vmem:[#allocation2] sm:$0xff] %v186
        $region40: #{tpu_custom_call.1} parent=27 // pred_fallthru
          _
        %p188 = scmp.ne.s32.totalorder %s23, 0
        // Predicated region
        $region41: #{tpu_custom_call.1} parent=27 // pred_check
          %p189 = pneg %p188
        $region42: #{tpu_custom_call.1} parent=27 // pred_check_branch
          %191 = sbr.rel (%p189) target = $region44
        $region43: #{tpu_custom_call.1} parent=27 // pred_region
          %v192 = vld [vmem:[#allocation2] sm:$0xff]
          %v193 = vstv %s179
          %v194 = vmul.f32 %v193, %v180
          %v195 = vadd.f32 %v192, %v194
          %196 = vst [vmem:[#allocation2] sm:$0xff] %v195
        $region44: #{tpu_custom_call.1} parent=27 // pred_fallthru
          _
        %p197 = scmp.eq.s32.totalorder %s23, 12
        // Predicated region
        $region45: #{tpu_custom_call.1} parent=27 // pred_check
          %p198 = pneg %p197
        $region46: #{tpu_custom_call.1} parent=27 // pred_check_branch
          %200 = sbr.rel (%p198) target = $region48
        $region47: #{tpu_custom_call.1} parent=27 // pred_region
          %v201 = vld [vmem:[#allocation2] sm:$0xff]
          %202 = vst [vmem:[#allocation8] sm:$0xff] %v201
        $region48: #{tpu_custom_call.1} parent=27 // pred_fallthru
          _
        // Predicated region
        $region49: #{tpu_custom_call.1} parent=27 // pred_check
          %p203 = pneg %p97
        $region50: #{tpu_custom_call.1} parent=27 // pred_check_branch
          %205 = sbr.rel (%p203) target = $region52
        $region51: #{tpu_custom_call.1} parent=27 // pred_region
          %s207 = ssub.s32 128, 128
          %208 = vsyncadd [#allocation5], %s207
          %s209 = smul.addr %s22, 128
          %s210 = scalar_lea.hbm %s2, %s209
          %s212 = sshll.u32 [#allocation8], 4
          %s213 = int_to_ptr.vmem [resolvable:$true] %s212
          %215 = dma.vmem_to_hbm [thread:$0]  %s213, 128, %s210, [#allocation5]
        $region52: #{tpu_custom_call.1} parent=27 // pred_fallthru
          _
        // Predicated region
        $region53: #{tpu_custom_call.1} parent=27 // pred_check
          %p216 = pneg %p97
        $region54: #{tpu_custom_call.1} parent=27 // pred_check_branch
          %218 = sbr.rel (%p216) target = $region56
        $region55: #{tpu_custom_call.1} parent=27 // pred_region
          %219 = dma.done [#allocation5], 128
        $region56: #{tpu_custom_call.1} parent=27 // pred_fallthru
          _
      $region28: #{tpu_custom_call.1} parent=5 // pred_fallthru
        _
      %p220 = scmp.le.s32.totalorder 2, %s13
      // Predicated region
      $region57: #{tpu_custom_call.1} parent=5 // pred_check
        %p221 = pneg %p220
      $region58: #{tpu_custom_call.1} parent=5 // pred_check_branch
        %223 = sbr.rel (%p221) target = $region60
      $region59: #{tpu_custom_call.1} parent=5 // pred_region
        %s224 = ssub.s32 %s13, 2
      $region60: #{tpu_custom_call.1} parent=5 // pred_fallthru
        _
    $region6: #{tpu_custom_call.1} parent=1 // loop_footer
      %s17 = sadd.s32 1, %s13
    $region7: #{tpu_custom_call.1} parent=1 // loop_footer_branch
      %12 = sbr.rel target = $region3
    $region8: #{tpu_custom_call.1} parent=1 // loop_exit
      _
    %225 = vsyncpa [#allocation4], 1
    %s226 = scalar_lea.sflag [#allocation4], 1
    %227 = vsyncpa %s226, 1
    %228 = vsyncpa [#allocation5], 1
    %s229 = scalar_lea.sflag [#allocation5], 1
    %230 = vsyncpa %s229, 1
    %231 = vsyncpa [#allocation6], 1
    %s232 = scalar_lea.sflag [#allocation6], 1
    %233 = vsyncpa %s232, 1

</llo_original>
